<compile_context>
chip_gen: v7x
topology: tpu7x:2x2x1
jax: 0.10.0
libtpu: 0.0.40
codegen_flags: <defaults>
</compile_context>

<pallas_src>
import functools

import jax
import jax.numpy as jnp
from jax.experimental import pallas as pl
from jax.experimental.pallas import tpu as pltpu

LN_EPS = 1e-5


def _psa_kernel(x_ref, wstk_ref, bstk_ref, wz_ref, col_ref, o_ref, *, c2):
    xs = x_ref[0]                                                       # (C, N) bf16

    # One weight-stationary MXU pass over x.
    # Stacked rows: [0:c2]=ch_wv  [c2:2c2]=sp_wv  [2c2:3c2]=sp_wq  [3c2]=ch_wq.
    stk = jnp.dot(wstk_ref[...], xs,
                  preferred_element_type=jnp.float32) + bstk_ref[...]   # (R, N) f32

    wv = stk[0:c2]                   # (C2, N) channel value
    sv = stk[c2:2 * c2]              # (C2, N) spatial value
    sq = stk[2 * c2:3 * c2]          # (C2, N) spatial query
    ql = stk[3 * c2:3 * c2 + 1]      # (1,  N) channel query logits

    col = col_ref[...]               # (C, 3) = [ch_wz_b | ln_gamma | ln_beta]

    # ---------------- channel branch ----------------
    q = ql - jnp.max(ql, axis=-1, keepdims=True)
    q = jnp.exp(q)
    q = q / jnp.sum(q, axis=-1, keepdims=True)                          # softmax over N

    # wv @ q^T as a broadcast-mul + lane reduce (no dense matmul), then the
    # cheap (C, C2) x (C2, 1) matvec for ch_wz.
    z = jnp.sum(wv * q, axis=-1, keepdims=True)                         # (C2, 1) f32
    wz = wz_ref[...]
    cz = jnp.dot(wz, z.astype(wz.dtype),
                 preferred_element_type=jnp.float32) + col[:, 0:1]      # (C, 1)

    # LayerNorm over the channel axis of the (C, 1) column, then sigmoid.
    mu = jnp.mean(cz, axis=0, keepdims=True)
    d = cz - mu
    var = jnp.mean(d * d, axis=0, keepdims=True)
    cw = jax.nn.sigmoid(d * jax.lax.rsqrt(var + LN_EPS) * col[:, 1:2]
                        + col[:, 2:3])                                  # (C, 1)

    # ---------------- spatial branch ----------------
    sp = jnp.mean(sq, axis=-1, keepdims=True)                           # (C2, 1) avg pool
    sp = sp - jnp.max(sp, axis=0, keepdims=True)
    sp = jnp.exp(sp)
    sp = sp / jnp.sum(sp, axis=0, keepdims=True)                        # softmax over C2
    sw = jax.nn.sigmoid(jnp.sum(sv * sp, axis=0, keepdims=True))        # (1, N)

    # out = spatial_out + channel_out + x = x * (1 + sw + cw)
    x32 = xs.astype(jnp.float32)
    o_ref[0] = (x32 * (1.0 + sw + cw)).astype(o_ref.dtype)


def psa_forward(x, p, *, matmul_dtype=jnp.bfloat16):
    """x: (B, C, H, W).  p: dict of PSA parameters (see init_params)."""
    B, C, H, W = x.shape
    C2 = C // 2
    N = H * W
    assert C % 16 == 0, "C and C//2 must be sublane-aligned (multiples of 8)"
    assert N % 128 == 0, "H*W must be a multiple of 128 for a lane-dense layout"

    R = 3 * C2 + 8  # stacked weight rows, padded to a sublane multiple

    # Lane-dense layout: spatial -> lanes, channels -> sublanes.  Matmul
    # operands go to bf16 (halves activation/weight HBM traffic); output keeps
    # x.dtype so the module's output contract is preserved.
    x3 = x.reshape(B, C, N).astype(matmul_dtype)

    # Stack the four channel-mixing 1x1 convs into one weight/bias pair.
    w_stack = jnp.zeros((R, C), jnp.float32)
    w_stack = w_stack.at[0:C2].set(p["ch_wv_w"])
    w_stack = w_stack.at[C2:2 * C2].set(p["sp_wv_w"])
    w_stack = w_stack.at[2 * C2:3 * C2].set(p["sp_wq_w"])
    w_stack = w_stack.at[3 * C2].set(p["ch_wq_w"])
    w_stack = w_stack.astype(matmul_dtype)

    b_stack = jnp.zeros((R, 1), jnp.float32)
    b_stack = b_stack.at[0:C2, 0].set(p["ch_wv_b"])
    b_stack = b_stack.at[C2:2 * C2, 0].set(p["sp_wv_b"])
    b_stack = b_stack.at[2 * C2:3 * C2, 0].set(p["sp_wq_b"])
    b_stack = b_stack.at[3 * C2, 0].set(p["ch_wq_b"][0])

    wz_w = p["ch_wz_w"].astype(matmul_dtype)                            # (C, C2)
    ch_cols = jnp.stack([p["ch_wz_b"], p["ln_g"], p["ln_b"]], axis=1)   # (C, 3) f32

    # Explicit scoped-VMEM budget: double-buffered in/out blocks + the stacked
    # matmul result, clamped to the device's capacity (with headroom).
    in_bytes = C * N * jnp.dtype(matmul_dtype).itemsize
    out_bytes = C * N * jnp.dtype(x.dtype).itemsize
    stk_bytes = R * N * 4
    need = 2 * (in_bytes + out_bytes) + 2 * stk_bytes + (4 << 20)
    try:
        cap = pltpu.get_tpu_info().vmem_capacity_bytes
    except Exception:
        cap = 64 << 20  # conservative (v7x per-TC VMEM)
    vmem_limit = int(min(cap - (4 << 20), max(need, 32 << 20)))

    kernel = functools.partial(_psa_kernel, c2=C2)

    def full(a):  # small parameter resident every grid step
        return pl.BlockSpec(a.shape, lambda b: (0, 0))

    # TODO(synk): add a second "parallel" grid axis (N-tile) so the grid has
    # more than B steps (keeps both v7x TensorCores busy for small/odd B).
    out3 = pl.pallas_call(
        kernel,
        out_shape=jax.ShapeDtypeStruct((B, C, N), x.dtype),
        grid_spec=pltpu.PrefetchScalarGridSpec(
            num_scalar_prefetch=0,
            grid=(B,),
            in_specs=[
                pl.BlockSpec((1, C, N), lambda b: (b, 0, 0)),
                full(w_stack), full(b_stack), full(wz_w), full(ch_cols),
            ],
            out_specs=pl.BlockSpec((1, C, N), lambda b: (b, 0, 0)),
        ),
        compiler_params=pltpu.CompilerParams(
            dimension_semantics=("parallel",),
            vmem_limit_bytes=vmem_limit),
    )(x3, w_stack, b_stack, wz_w, ch_cols)

    return out3.reshape(B, C, H, W)


def init_params(key, C):
    """Deterministic params mimicking PyTorch Conv2d / LayerNorm defaults."""
    C2 = C // 2
    ks = jax.random.split(key, 5)

    def conv_init(k, out_ch, in_ch):
        bound = 1.0 / (in_ch ** 0.5)          # 1x1 conv: fan_in = in_ch
        kw_, kb_ = jax.random.split(k)
        w = jax.random.uniform(kw_, (out_ch, in_ch), jnp.float32, -bound, bound)
        b = jax.random.uniform(kb_, (out_ch,), jnp.float32, -bound, bound)
        return w, b

    ch_wv_w, ch_wv_b = conv_init(ks[0], C2, C)
    ch_wq_w, ch_wq_b = conv_init(ks[1], 1, C)
    ch_wz_w, ch_wz_b = conv_init(ks[2], C, C2)
    sp_wv_w, sp_wv_b = conv_init(ks[3], C2, C)
    sp_wq_w, sp_wq_b = conv_init(ks[4], C2, C)
    return dict(
        ch_wv_w=ch_wv_w, ch_wv_b=ch_wv_b,
        ch_wq_w=ch_wq_w.reshape(C), ch_wq_b=ch_wq_b,
        ch_wz_w=ch_wz_w, ch_wz_b=ch_wz_b,
        ln_g=jnp.ones((C,), jnp.float32), ln_b=jnp.zeros((C,), jnp.float32),
        sp_wv_w=sp_wv_w, sp_wv_b=sp_wv_b,
        sp_wq_w=sp_wq_w, sp_wq_b=sp_wq_b,
    )


def _reference(x, p, matmul_dtype=jnp.float32):
    """Pure-JAX reference mirroring the PyTorch PSA forward op-for-op.

    `matmul_dtype` selects the precision of the 1x1-conv contractions so the
    kernel (bf16 MXU operands, f32 accumulation) can be checked against a
    matching-precision oracle.  All non-matmul math stays in f32.
    """
    B, C, H, W = x.shape
    N = H * W
    xr = x.reshape(B, C, N).astype(jnp.float32)
    xm = xr.astype(matmul_dtype)

    def mm(w):  # (O, C) 1x1 conv over flattened spatial dims, f32 accumulation
        return jnp.einsum("oc,bcn->bon", w.astype(matmul_dtype), xm,
                          preferred_element_type=jnp.float32)

    # channel branch
    wv = mm(p["ch_wv_w"]) + p["ch_wv_b"][None, :, None]
    wq = jnp.einsum("c,bcn->bn", p["ch_wq_w"].astype(matmul_dtype), xm,
                    preferred_element_type=jnp.float32) + p["ch_wq_b"]
    wq = jax.nn.softmax(wq, axis=-1)
    z = jnp.einsum("bon,bn->bo", wv, wq, precision="highest")           # (B, C//2)
    cz = jnp.einsum("co,bo->bc", p["ch_wz_w"].astype(matmul_dtype),
                    z.astype(matmul_dtype),
                    preferred_element_type=jnp.float32) + p["ch_wz_b"][None, :]
    mu = jnp.mean(cz, axis=-1, keepdims=True)
    var = jnp.mean((cz - mu) ** 2, axis=-1, keepdims=True)
    cn = (cz - mu) / jnp.sqrt(var + LN_EPS)
    cw = jax.nn.sigmoid(cn * p["ln_g"][None, :] + p["ln_b"][None, :])   # (B, C)
    channel_out = cw[:, :, None] * xr

    # spatial branch
    sv = mm(p["sp_wv_w"]) + p["sp_wv_b"][None, :, None]
    sq = mm(p["sp_wq_w"]) + p["sp_wq_b"][None, :, None]
    sqp = jax.nn.softmax(jnp.mean(sq, axis=-1), axis=-1)                # (B, C//2)
    sz = jnp.einsum("bo,bon->bn", sqp, sv, precision="highest")         # (B, N)
    sw = jax.nn.sigmoid(sz)
    spatial_out = sw[:, None, :] * xr

    out = spatial_out + channel_out + xr
    return out.reshape(B, C, H, W)


if __name__ == "__main__":
    key = jax.random.PRNGKey(0)
    kx, kp = jax.random.split(key)

    # Small but TPU-friendly shapes: C, C//2 sublane-aligned, H*W = 256 lanes.
    B, C, H, W = 2, 64, 16, 16
    x = jax.random.normal(kx, (B, C, H, W), dtype=jnp.float32)
    params = init_params(kp, C)

    out = jax.block_until_ready(psa_forward(x, params))
    assert out.shape == (B, C, H, W) and out.dtype == x.dtype

    # Precision-matched oracle: same bf16-quantized x / weights feeding the
    # matmuls, everything else f32 (mirrors the kernel exactly).
    xq = x.astype(jnp.bfloat16).astype(jnp.float32)
    ref = _reference(xq, params, matmul_dtype=jnp.bfloat16)
    max_err = float(jnp.max(jnp.abs(out - ref)))
    assert jnp.allclose(out, ref, atol=5e-3, rtol=5e-3), \
        f"mismatch vs matched-precision reference: {max_err}"

    print("KERNEL_OK")
</pallas_src>

<mosaic_0001>
module attributes {stable_mosaic.version = 11 : i64} {
  func.func @_psa_kernel(%arg0: i32, %arg1: memref<1x64x256xbf16, #tpu.memory_space<vmem>>, %arg2: memref<104x64xbf16, #tpu.memory_space<vmem>>, %arg3: memref<104x1xf32, #tpu.memory_space<vmem>>, %arg4: memref<64x32xbf16, #tpu.memory_space<vmem>>, %arg5: memref<64x3xf32, #tpu.memory_space<vmem>>, %arg6: memref<1x64x256xf32, #tpu.memory_space<vmem>>) attributes {dimension_semantics = [#tpu.dimension_semantics<parallel>], iteration_bounds = array<i64: 2>, scalar_prefetch = 0 : i64, scratch_operands = 0 : i64, tpu.core_type = #tpu.core_type<tc>, window_params = [{transform_indices = @transform_0, window_bounds = array<i64: 1, 64, 256>}, {pipeline_mode = #tpu.pipeline_mode<synchronous>, transform_indices = @transform_1, window_bounds = array<i64: 104, 64>}, {pipeline_mode = #tpu.pipeline_mode<synchronous>, transform_indices = @transform_2, window_bounds = array<i64: 104, 1>}, {pipeline_mode = #tpu.pipeline_mode<synchronous>, transform_indices = @transform_3, window_bounds = array<i64: 64, 32>}, {pipeline_mode = #tpu.pipeline_mode<synchronous>, transform_indices = @transform_4, window_bounds = array<i64: 64, 3>}, {transform_indices = @transform_5, window_bounds = array<i64: 1, 64, 256>}]} {
    %c0 = arith.constant 0 : index
    %c0_0 = arith.constant 0 : index
    %c0_1 = arith.constant 0 : index
    %0 = vector.load %arg1[%c0, %c0_0, %c0_1] : memref<1x64x256xbf16, #tpu.memory_space<vmem>>, vector<1x64x256xbf16>
    %1 = vector.shape_cast %0 : vector<1x64x256xbf16> to vector<64x256xbf16>
    %c0_2 = arith.constant 0 : index
    %c0_3 = arith.constant 0 : index
    %2 = vector.load %arg2[%c0_2, %c0_3] : memref<104x64xbf16, #tpu.memory_space<vmem>>, vector<104x64xbf16>
    %cst = arith.constant dense<0.000000e+00> : vector<104x256xf32>
    %3 = tpu.matmul %2, %1, %cst {dimension_numbers = #tpu.dot_dimension_numbers<[1], [0], [0], [1], [0, 0, 1, 1], [], []>} : vector<104x64xbf16>, vector<64x256xbf16>, vector<104x256xf32> -> vector<104x256xf32>
    %c0_4 = arith.constant 0 : index
    %c0_5 = arith.constant 0 : index
    %4 = vector.load %arg3[%c0_4, %c0_5] : memref<104x1xf32, #tpu.memory_space<vmem>>, vector<104x1xf32>
    %5 = vector.broadcast %4 : vector<104x1xf32> to vector<104x256xf32>
    %6 = arith.addf %3, %5 : vector<104x256xf32>
    %7 = vector.extract_strided_slice %6 {offsets = [0, 0], sizes = [32, 256], strides = [1, 1]} : vector<104x256xf32> to vector<32x256xf32>
    %8 = vector.extract_strided_slice %6 {offsets = [32, 0], sizes = [32, 256], strides = [1, 1]} : vector<104x256xf32> to vector<32x256xf32>
    %9 = vector.extract_strided_slice %6 {offsets = [64, 0], sizes = [32, 256], strides = [1, 1]} : vector<104x256xf32> to vector<32x256xf32>
    %10 = vector.extract_strided_slice %6 {offsets = [96, 0], sizes = [1, 256], strides = [1, 1]} : vector<104x256xf32> to vector<1x256xf32>
    %c0_6 = arith.constant 0 : index
    %c0_7 = arith.constant 0 : index
    %11 = vector.load %arg5[%c0_6, %c0_7] : memref<64x3xf32, #tpu.memory_space<vmem>>, vector<64x3xf32>
    %cst_8 = arith.constant dense<0xFF800000> : vector<1xf32>
    %12 = vector.multi_reduction <maximumf>, %10, %cst_8 [1] : vector<1x256xf32> to vector<1xf32>
    %13 = vector.shape_cast %12 : vector<1xf32> to vector<1x1xf32>
    %14 = vector.broadcast %13 : vector<1x1xf32> to vector<1x256xf32>
    %15 = arith.subf %10, %14 : vector<1x256xf32>
    %16 = math.exp %15 : vector<1x256xf32>
    %cst_9 = arith.constant dense<0.000000e+00> : vector<1xf32>
    %17 = vector.multi_reduction <add>, %16, %cst_9 [1] : vector<1x256xf32> to vector<1xf32>
    %18 = vector.shape_cast %17 : vector<1xf32> to vector<1x1xf32>
    %19 = vector.broadcast %18 : vector<1x1xf32> to vector<1x256xf32>
    %20 = arith.divf %16, %19 : vector<1x256xf32>
    %21 = vector.broadcast %20 : vector<1x256xf32> to vector<32x256xf32>
    %22 = arith.mulf %7, %21 : vector<32x256xf32>
    %cst_10 = arith.constant dense<0.000000e+00> : vector<32xf32>
    %23 = vector.multi_reduction <add>, %22, %cst_10 [1] : vector<32x256xf32> to vector<32xf32>
    %24 = vector.shape_cast %23 : vector<32xf32> to vector<32x1xf32>
    %c0_11 = arith.constant 0 : index
    %c0_12 = arith.constant 0 : index
    %25 = vector.load %arg4[%c0_11, %c0_12] : memref<64x32xbf16, #tpu.memory_space<vmem>>, vector<64x32xbf16>
    %26 = arith.truncf %24 : vector<32x1xf32> to vector<32x1xbf16>
    %cst_13 = arith.constant dense<0.000000e+00> : vector<64x1xf32>
    %27 = tpu.matmul %25, %26, %cst_13 {dimension_numbers = #tpu.dot_dimension_numbers<[1], [0], [0], [1], [0, 0, 1, 1], [], []>} : vector<64x32xbf16>, vector<32x1xbf16>, vector<64x1xf32> -> vector<64x1xf32>
    %28 = vector.extract_strided_slice %11 {offsets = [0, 0], sizes = [64, 1], strides = [1, 1]} : vector<64x3xf32> to vector<64x1xf32>
    %29 = arith.addf %27, %28 : vector<64x1xf32>
    %cst_14 = arith.constant dense<0.000000e+00> : vector<1xf32>
    %30 = vector.multi_reduction <add>, %29, %cst_14 [0] : vector<64x1xf32> to vector<1xf32>
    %31 = vector.shape_cast %30 : vector<1xf32> to vector<1x1xf32>
    %cst_15 = arith.constant 6.400000e+01 : f32
    %32 = vector.broadcast %cst_15 : f32 to vector<1x1xf32>
    %33 = arith.divf %31, %32 : vector<1x1xf32>
    %34 = vector.broadcast %33 : vector<1x1xf32> to vector<64x1xf32>
    %35 = arith.subf %29, %34 : vector<64x1xf32>
    %36 = arith.mulf %35, %35 : vector<64x1xf32>
    %cst_16 = arith.constant dense<0.000000e+00> : vector<1xf32>
    %37 = vector.multi_reduction <add>, %36, %cst_16 [0] : vector<64x1xf32> to vector<1xf32>
    %38 = vector.shape_cast %37 : vector<1xf32> to vector<1x1xf32>
    %cst_17 = arith.constant 6.400000e+01 : f32
    %39 = vector.broadcast %cst_17 : f32 to vector<1x1xf32>
    %40 = arith.divf %38, %39 : vector<1x1xf32>
    %cst_18 = arith.constant 9.99999974E-6 : f32
    %41 = vector.broadcast %cst_18 : f32 to vector<1x1xf32>
    %42 = arith.addf %40, %41 : vector<1x1xf32>
    %43 = math.rsqrt %42 : vector<1x1xf32>
    %44 = vector.broadcast %43 : vector<1x1xf32> to vector<64x1xf32>
    %45 = arith.mulf %35, %44 : vector<64x1xf32>
    %46 = vector.extract_strided_slice %11 {offsets = [0, 1], sizes = [64, 1], strides = [1, 1]} : vector<64x3xf32> to vector<64x1xf32>
    %47 = arith.mulf %45, %46 : vector<64x1xf32>
    %48 = vector.extract_strided_slice %11 {offsets = [0, 2], sizes = [64, 1], strides = [1, 1]} : vector<64x3xf32> to vector<64x1xf32>
    %49 = arith.addf %47, %48 : vector<64x1xf32>
    %50 = arith.negf %49 : vector<64x1xf32>
    %51 = math.exp %50 : vector<64x1xf32>
    %cst_19 = arith.constant 1.000000e+00 : f32
    %52 = vector.broadcast %cst_19 : f32 to vector<64x1xf32>
    %53 = arith.addf %52, %51 : vector<64x1xf32>
    %54 = arith.divf %52, %53 : vector<64x1xf32>
    %cst_20 = arith.constant dense<0.000000e+00> : vector<32xf32>
    %55 = vector.multi_reduction <add>, %9, %cst_20 [1] : vector<32x256xf32> to vector<32xf32>
    %56 = vector.shape_cast %55 : vector<32xf32> to vector<32x1xf32>
    %cst_21 = arith.constant 2.560000e+02 : f32
    %57 = vector.broadcast %cst_21 : f32 to vector<32x1xf32>
    %58 = arith.divf %56, %57 : vector<32x1xf32>
    %cst_22 = arith.constant dense<0xFF800000> : vector<1xf32>
    %59 = vector.multi_reduction <maximumf>, %58, %cst_22 [0] : vector<32x1xf32> to vector<1xf32>
    %60 = vector.shape_cast %59 : vector<1xf32> to vector<1x1xf32>
    %61 = vector.broadcast %60 : vector<1x1xf32> to vector<32x1xf32>
    %62 = arith.subf %58, %61 : vector<32x1xf32>
    %63 = math.exp %62 : vector<32x1xf32>
    %cst_23 = arith.constant dense<0.000000e+00> : vector<1xf32>
    %64 = vector.multi_reduction <add>, %63, %cst_23 [0] : vector<32x1xf32> to vector<1xf32>
    %65 = vector.shape_cast %64 : vector<1xf32> to vector<1x1xf32>
    %66 = vector.broadcast %65 : vector<1x1xf32> to vector<32x1xf32>
    %67 = arith.divf %63, %66 : vector<32x1xf32>
    %68 = vector.broadcast %67 : vector<32x1xf32> to vector<32x256xf32>
    %69 = arith.mulf %8, %68 : vector<32x256xf32>
    %cst_24 = arith.constant dense<0.000000e+00> : vector<256xf32>
    %70 = vector.multi_reduction <add>, %69, %cst_24 [0] : vector<32x256xf32> to vector<256xf32>
    %71 = vector.shape_cast %70 : vector<256xf32> to vector<1x256xf32>
    %72 = arith.negf %71 : vector<1x256xf32>
    %73 = math.exp %72 : vector<1x256xf32>
    %cst_25 = arith.constant 1.000000e+00 : f32
    %74 = vector.broadcast %cst_25 : f32 to vector<1x256xf32>
    %75 = arith.addf %74, %73 : vector<1x256xf32>
    %76 = arith.divf %74, %75 : vector<1x256xf32>
    %77 = arith.extf %1 : vector<64x256xbf16> to vector<64x256xf32>
    %cst_26 = arith.constant 1.000000e+00 : f32
    %78 = vector.broadcast %cst_26 : f32 to vector<1x256xf32>
    %79 = arith.addf %78, %76 : vector<1x256xf32>
    %80 = vector.broadcast %79 : vector<1x256xf32> to vector<64x256xf32>
    %81 = vector.broadcast %54 : vector<64x1xf32> to vector<64x256xf32>
    %82 = arith.addf %80, %81 : vector<64x256xf32>
    %83 = arith.mulf %77, %82 : vector<64x256xf32>
    %c0_27 = arith.constant 0 : index
    %c0_28 = arith.constant 0 : index
    %c0_29 = arith.constant 0 : index
    %84 = vector.load %arg6[%c0_27, %c0_28, %c0_29] : memref<1x64x256xf32, #tpu.memory_space<vmem>>, vector<1x64x256xf32>
    %85 = vector.shape_cast %84 : vector<1x64x256xf32> to vector<64x256xf32>
    %86 = vector.shape_cast %83 : vector<64x256xf32> to vector<1x64x256xf32>
    tpu.vector_store %arg6[%c0_27, %c0_28, %c0_29], %86 {strides = array<i32>} : memref<1x64x256xf32, #tpu.memory_space<vmem>>, vector<1x64x256xf32>,
    return
  }
  func.func @transform_0(%arg0: i32) -> (i32, i32, i32) {
    %c0_i32 = arith.constant 0 : i32
    %c0_i32_0 = arith.constant 0 : i32
    %c0_i32_1 = arith.constant 0 : i32
    return %arg0, %c0_i32, %c0_i32_0 : i32, i32, i32
  }
  func.func @transform_1(%arg0: i32) -> (i32, i32) {
    %c0_i32 = arith.constant 0 : i32
    %c0_i32_0 = arith.constant 0 : i32
    %c0_i32_1 = arith.constant 0 : i32
    return %c0_i32, %c0_i32_0 : i32, i32
  }
  func.func @transform_2(%arg0: i32) -> (i32, i32) {
    %c0_i32 = arith.constant 0 : i32
    %c0_i32_0 = arith.constant 0 : i32
    %c0_i32_1 = arith.constant 0 : i32
    return %c0_i32, %c0_i32_0 : i32, i32
  }
  func.func @transform_3(%arg0: i32) -> (i32, i32) {
    %c0_i32 = arith.constant 0 : i32
    %c0_i32_0 = arith.constant 0 : i32
    %c0_i32_1 = arith.constant 0 : i32
    return %c0_i32, %c0_i32_0 : i32, i32
  }
  func.func @transform_4(%arg0: i32) -> (i32, i32) {
    %c0_i32 = arith.constant 0 : i32
    %c0_i32_0 = arith.constant 0 : i32
    %c0_i32_1 = arith.constant 0 : i32
    return %c0_i32, %c0_i32_0 : i32, i32
  }
  func.func @transform_5(%arg0: i32) -> (i32, i32, i32) {
    %c0_i32 = arith.constant 0 : i32
    %c0_i32_0 = arith.constant 0 : i32
    %c0_i32_1 = arith.constant 0 : i32
    return %arg0, %c0_i32, %c0_i32_0 : i32, i32, i32
  }
}

</mosaic_0001>

<llo_original>
// kernel: tpu_custom_call.1
$region0: #{tpu_custom_call.1}
  #allocation0 [shape = 'u32[]', space=smem, size = 0x4, offset = 0x4, fixed_abs, tag = 'smem constant byte address 0x4 - core index']
  #allocation1 [shape = 'u32[144,128]{1,0:T(1,128)}', space=vmem, size = 0x12000, scoped, tag = 'internal scratch']
  %s0 = inlined_call_operand.vmem [shape: bf16[2,64,256], index: 0, kind: input, shape index: {}]
  %s1 = inlined_call_operand.vmem [shape: bf16[104,64], index: 1, kind: input, shape index: {}]
  %s2 = inlined_call_operand.vmem [shape: f32[104,1], index: 2, kind: input, shape index: {}]
  %s3 = inlined_call_operand.vmem [shape: bf16[64,32], index: 3, kind: input, shape index: {}]
  %s4 = inlined_call_operand.vmem [shape: f32[64,3], index: 4, kind: input, shape index: {}]
  %s5 = inlined_call_operand.hbm [shape: f32[2,64,256], index: 5, kind: output, shape index: {}]
  %s6 = sld [smem:[#allocation0]]
  $region53: #{tpu_custom_call.1} parent=0
    _
  %s8 = ssub.s32 1, %s6
  %s9 = scalar_select 0, %s8, %s6
  $region1: #{tpu_custom_call.1} parent=0
    #allocation2 [shape = 'u8[131072]{0}', space=vmem, size = 0x20000, scoped, tag = 'output window, operand 0']
    #allocation3 [shape = 's32[2]{0}', space=sflag, size = 0x8, scoped, tag = 'scoped memory for tpu_custom_call.1']
    %10 = vsyncpa [#allocation3], 0
    %s11 = scalar_lea.sflag [#allocation3], 1
    %12 = vsyncpa %s11, 0
    loop: start=0, step=1, limit=4
    $region2: #{tpu_custom_call.1} parent=1 // loop_pre_header
      _
    $region3: #{tpu_custom_call.1} parent=1 // loop_header
      %s14 = sphi 0, %s18
      %p15 = scmp.ge.s32.totalorder %s14, 4
      %s24 = sphi 0, %s26
      %s27 = sphi 0, %s24
      %s28 = sphi 0, %s27
      %s44 = sphi 0, %s28
      %s48 = sphi 0, %s48
      %s50 = sphi 0, %s48
      %s51 = sphi 0, %s50
      %s65 = sphi 0, %s51
      %s69 = sphi 0, %s69
      %s71 = sphi 0, %s69
      %s72 = sphi 0, %s71
      %s86 = sphi 0, %s72
      %s90 = sphi 0, %s90
      %s92 = sphi 0, %s90
      %s93 = sphi 0, %s92
      %s107 = sphi 0, %s93
      %s111 = sphi 0, %s111
      %s113 = sphi 0, %s111
      %s114 = sphi 0, %s113
      %s128 = sphi 0, %s114
      %s134 = sphi 0, %s136
      %s137 = sphi 0, %s134
      %s138 = sphi 0, %s137
      %s154 = sphi 0, %s138
    $region4: #{tpu_custom_call.1} parent=1 // loop_header_branch
      %17 = sbr.rel (%p15) target = $region8
    $region5: #{tpu_custom_call.1} parent=1 // loop_body
      %s19 = ssub.s32 %s14, 1
      %s20 = ssub.s32 %s14, 2
      %s21 = sadd.s32 %s14, 1
      %s22 = ssub.s32 %s14, %s21
      %p23 = scmp.eq.s32.totalorder %s22, 0
      %s25 = sadd.s32 %s24, 1
      %s26 = scalar_select %p23, %s24, %s25
      %p29 = pneg %p23
      %p30 = scmp.eq.s32.totalorder %s14, 1
      %p31 = por %p29, %p30
      %p32 = scmp.ne.s32.totalorder %s24, %s27
      %p33 = scmp.eq.s32.totalorder %s14, 0
      %p34 = por %p32, %p33
      %p35 = scmp.ne.s32.totalorder %s24, %s27
      %p36 = scmp.eq.s32.totalorder %s19, 1
      %p37 = por %p35, %p36
      %p38 = scmp.ne.s32.totalorder %s27, %s28
      %p39 = scmp.eq.s32.totalorder %s19, 0
      %p40 = por %p38, %p39
      %p41 = scmp.ne.s32.totalorder %s27, %s28
      %p42 = scmp.eq.s32.totalorder %s20, 1
      %p43 = por %p41, %p42
      %p45 = scmp.ne.s32.totalorder %s28, %s44
      %p46 = scmp.eq.s32.totalorder %s20, 0
      %p47 = por %p45, %p46
      %s49 = sadd.s32 %s48, 1
      %p52 = scmp.eq.s32.totalorder %s14, 1
      %p53 = scmp.ne.s32.totalorder %s48, %s50
      %p54 = scmp.eq.s32.totalorder %s14, 0
      %p55 = por %p53, %p54
      %p56 = scmp.ne.s32.totalorder %s48, %s50
      %p57 = scmp.eq.s32.totalorder %s19, 1
      %p58 = por %p56, %p57
      %p59 = scmp.ne.s32.totalorder %s50, %s51
      %p60 = scmp.eq.s32.totalorder %s19, 0
      %p61 = por %p59, %p60
      %p62 = scmp.ne.s32.totalorder %s50, %s51
      %p63 = scmp.eq.s32.totalorder %s20, 1
      %p64 = por %p62, %p63
      %p66 = scmp.ne.s32.totalorder %s51, %s65
      %p67 = scmp.eq.s32.totalorder %s20, 0
      %p68 = por %p66, %p67
      %s70 = sadd.s32 %s69, 1
      %p73 = scmp.eq.s32.totalorder %s14, 1
      %p74 = scmp.ne.s32.totalorder %s69, %s71
      %p75 = scmp.eq.s32.totalorder %s14, 0
      %p76 = por %p74, %p75
      %p77 = scmp.ne.s32.totalorder %s69, %s71
      %p78 = scmp.eq.s32.totalorder %s19, 1
      %p79 = por %p77, %p78
      %p80 = scmp.ne.s32.totalorder %s71, %s72
      %p81 = scmp.eq.s32.totalorder %s19, 0
      %p82 = por %p80, %p81
      %p83 = scmp.ne.s32.totalorder %s71, %s72
      %p84 = scmp.eq.s32.totalorder %s20, 1
      %p85 = por %p83, %p84
      %p87 = scmp.ne.s32.totalorder %s72, %s86
      %p88 = scmp.eq.s32.totalorder %s20, 0
      %p89 = por %p87, %p88
      %s91 = sadd.s32 %s90, 1
      %p94 = scmp.eq.s32.totalorder %s14, 1
      %p95 = scmp.ne.s32.totalorder %s90, %s92
      %p96 = scmp.eq.s32.totalorder %s14, 0
      %p97 = por %p95, %p96
      %p98 = scmp.ne.s32.totalorder %s90, %s92
      %p99 = scmp.eq.s32.totalorder %s19, 1
      %p100 = por %p98, %p99
      %p101 = scmp.ne.s32.totalorder %s92, %s93
      %p102 = scmp.eq.s32.totalorder %s19, 0
      %p103 = por %p101, %p102
      %p104 = scmp.ne.s32.totalorder %s92, %s93
      %p105 = scmp.eq.s32.totalorder %s20, 1
      %p106 = por %p104, %p105
      %p108 = scmp.ne.s32.totalorder %s93, %s107
      %p109 = scmp.eq.s32.totalorder %s20, 0
      %p110 = por %p108, %p109
      %s112 = sadd.s32 %s111, 1
      %p115 = scmp.eq.s32.totalorder %s14, 1
      %p116 = scmp.ne.s32.totalorder %s111, %s113
      %p117 = scmp.eq.s32.totalorder %s14, 0
      %p118 = por %p116, %p117
      %p119 = scmp.ne.s32.totalorder %s111, %s113
      %p120 = scmp.eq.s32.totalorder %s19, 1
      %p121 = por %p119, %p120
      %p122 = scmp.ne.s32.totalorder %s113, %s114
      %p123 = scmp.eq.s32.totalorder %s19, 0
      %p124 = por %p122, %p123
      %p125 = scmp.ne.s32.totalorder %s113, %s114
      %p126 = scmp.eq.s32.totalorder %s20, 1
      %p127 = por %p125, %p126
      %p129 = scmp.ne.s32.totalorder %s114, %s128
      %p130 = scmp.eq.s32.totalorder %s20, 0
      %p131 = por %p129, %p130
      %s132 = ssub.s32 %s14, %s21
      %p133 = scmp.eq.s32.totalorder %s132, 0
      %s135 = sadd.s32 %s134, 1
      %s136 = scalar_select %p133, %s134, %s135
      %p139 = pneg %p133
      %p140 = scmp.eq.s32.totalorder %s14, 1
      %p141 = por %p139, %p140
      %p142 = scmp.ne.s32.totalorder %s134, %s137
      %p143 = scmp.eq.s32.totalorder %s14, 0
      %p144 = por %p142, %p143
      %p145 = scmp.ne.s32.totalorder %s134, %s137
      %p146 = scmp.eq.s32.totalorder %s19, 1
      %p147 = por %p145, %p146
      %p148 = scmp.ne.s32.totalorder %s137, %s138
      %p149 = scmp.eq.s32.totalorder %s19, 0
      %p150 = por %p148, %p149
      %p151 = scmp.ne.s32.totalorder %s137, %s138
      %p152 = scmp.eq.s32.totalorder %s20, 1
      %p153 = por %p151, %p152
      %p155 = scmp.ne.s32.totalorder %s138, %s154
      %p156 = scmp.eq.s32.totalorder %s20, 0
      %p157 = por %p155, %p156
      %p158 = scmp.le.s32.totalorder 1, %s14
      %p159 = scmp.lt.s32.totalorder %s14, 3
      %p160 = pnand %p158, %p159
      %p161 = pneg %p160
      // Predicated region
      $region9: #{tpu_custom_call.1} parent=5 // pred_check
        _
      $region10: #{tpu_custom_call.1} parent=5 // pred_check_branch
        %163 = sbr.rel (%p160) target = $region12
      $region11: #{tpu_custom_call.1} parent=5 // pred_region
        %s164 = ssub.s32 %s14, 1
        // Predicated region
        $region13: #{tpu_custom_call.1} parent=11 // pred_check
          %p165 = pneg %p61
        $region14: #{tpu_custom_call.1} parent=11 // pred_check_branch
          %167 = sbr.rel (%p165) target = $region16
        $region15: #{tpu_custom_call.1} parent=11 // pred_region
          _
        $region16: #{tpu_custom_call.1} parent=11 // pred_fallthru
          _
        // Predicated region
        $region17: #{tpu_custom_call.1} parent=11 // pred_check
          %p168 = pneg %p82
        $region18: #{tpu_custom_call.1} parent=11 // pred_check_branch
          %170 = sbr.rel (%p168) target = $region20
        $region19: #{tpu_custom_call.1} parent=11 // pred_region
          _
        $region20: #{tpu_custom_call.1} parent=11 // pred_fallthru
          _
        // Predicated region
        $region21: #{tpu_custom_call.1} parent=11 // pred_check
          %p171 = pneg %p103
        $region22: #{tpu_custom_call.1} parent=11 // pred_check_branch
          %173 = sbr.rel (%p171) target = $region24
        $region23: #{tpu_custom_call.1} parent=11 // pred_region
          _
        $region24: #{tpu_custom_call.1} parent=11 // pred_fallthru
          _
        // Predicated region
        $region25: #{tpu_custom_call.1} parent=11 // pred_check
          %p174 = pneg %p124
        $region26: #{tpu_custom_call.1} parent=11 // pred_check_branch
          %176 = sbr.rel (%p174) target = $region28
        $region27: #{tpu_custom_call.1} parent=11 // pred_region
          _
        $region28: #{tpu_custom_call.1} parent=11 // pred_fallthru
          _
      $region12: #{tpu_custom_call.1} parent=5 // pred_fallthru
        _
      %p177 = scmp.lt.s32.totalorder %s14, 2
      // Predicated region
      $region29: #{tpu_custom_call.1} parent=5 // pred_check
        %p178 = pneg %p177
      $region30: #{tpu_custom_call.1} parent=5 // pred_check_branch
        %180 = sbr.rel (%p178) target = $region32
      $region31: #{tpu_custom_call.1} parent=5 // pred_region
        // Predicated region
        $region33: #{tpu_custom_call.1} parent=31 // pred_check
          %p181 = pneg %p34
        $region34: #{tpu_custom_call.1} parent=31 // pred_check_branch
          %183 = sbr.rel (%p181) target = $region36
        $region35: #{tpu_custom_call.1} parent=31 // pred_region
          %p184 = scmp.lt.s32.totalorder %s14, 1
          %s185 = scalar_select %p184, %s14, 1
          %s186 = smul.addr %s185, 16
          %s187 = smul.addr %s186, 4
          %s188 = scalar_lea.vmem %s0, %s187
        $region36: #{tpu_custom_call.1} parent=31 // pred_fallthru
          _
      $region32: #{tpu_custom_call.1} parent=5 // pred_fallthru
        _
      %p189 = scmp.le.s32.totalorder 1, %s14
      %p190 = scmp.lt.s32.totalorder %s14, 3
      %p191 = pnand %p189, %p190
      %p192 = pneg %p191
      // Predicated region
      $region37: #{tpu_custom_call.1} parent=5 // pred_check
        _
      $region38: #{tpu_custom_call.1} parent=5 // pred_check_branch
        %194 = sbr.rel (%p191) target = $region40
      $region39: #{tpu_custom_call.1} parent=5 // pred_region
        %s195 = ssub.s32 %s14, 1
        %p196 = scmp.lt.s32.totalorder %s19, 1
        %s197 = scalar_select %p196, %s19, 1
        %s198 = smul.addr %s197, 16
        %s199 = smul.addr %s198, 4
        %s200 = scalar_lea.vmem %s0, %s199
        %p201 = pneg %p40
        %p202 = pneg %p37
        %p203 = pneg %p61
        %p204 = pneg %p58
        %p205 = pneg %p82
        %p206 = pneg %p79
        %p207 = pneg %p103
        %p208 = pneg %p100
        %p209 = pneg %p124
        %p210 = pneg %p121
        %p211 = pneg %p150
        %p212 = pneg %p147
        %s213 = sand.u32 %s137, 1
        %s214 = scalar_lea.sflag [#allocation3], %s213
        %s215 = sand.u32 %s137, 1
        %s216 = smul.addr %s215, 128
        %s217 = scalar_lea.vmem [#allocation2], %s216
        %p218 = scmp.lt.s32.totalorder %s19, 1
        %s219 = scalar_select %p218, %s19, 1
        %s220 = smul.addr %s219, 16
        %s221 = smul.addr %s220, 4
        %s222 = scalar_lea.vmem %s0, %s221
        %v224 = vld [vmem:[%s222] sm:$0xff]
        %v225 = vld [vmem:[%s222 + $0x8] sm:$0xff]
        %v226 = vld [vmem:[%s222 + $0x10] sm:$0xff]
        %v227 = vld [vmem:[%s222 + $0x18] sm:$0xff]
        %v228 = vld [vmem:[%s222 + $0x20] sm:$0xff]
        %v229 = vld [vmem:[%s222 + $0x28] sm:$0xff]
        %v230 = vld [vmem:[%s222 + $0x30] sm:$0xff]
        %v231 = vld [vmem:[%s222 + $0x38] sm:$0xff]
        %v232 = vld [vmem:[%s1] sm:$0xf]
        %v233 = vld [vmem:[%s1 + $0x4] sm:$0xf]
        %v234 = vld [vmem:[%s1 + $0x8] sm:$0xf]
        %v235 = vld [vmem:[%s1 + $0xc] sm:$0xf]
        %v236 = vld [vmem:[%s1 + $0x10] sm:$0xf]
        %v237 = vld [vmem:[%s1 + $0x14] sm:$0xf]
        %v238 = vld [vmem:[%s1 + $0x18] sm:$0xf]
        %v239 = vld [vmem:[%s1 + $0x1c] sm:$0xf]
        %v240 = vld [vmem:[%s1 + $0x20] sm:$0xf]
        %v241 = vld [vmem:[%s1 + $0x24] sm:$0xf]
        %v242 = vld [vmem:[%s1 + $0x28] sm:$0xf]
        %v243 = vld [vmem:[%s1 + $0x2c] sm:$0xf]
        %v244 = vld [vmem:[%s1 + $0x30] sm:$0xf]
        %v245 = vld [vmem:[%s2] sm:$0xff]
        %v246 = vld [vmem:[%s2 + $0x8] sm:$0xff]
        %v247 = vld [vmem:[%s2 + $0x10] sm:$0xff]
        %v248 = vld [vmem:[%s2 + $0x18] sm:$0xff]
        %v249 = vld [vmem:[%s2 + $0x20] sm:$0xff]
        %v250 = vld [vmem:[%s2 + $0x28] sm:$0xff]
        %v251 = vld [vmem:[%s2 + $0x30] sm:$0xff]
        %v252 = vld [vmem:[%s2 + $0x38] sm:$0xff]
        %v253 = vld [vmem:[%s2 + $0x40] sm:$0xff]
        %v254 = vld [vmem:[%s2 + $0x48] sm:$0xff]
        %v255 = vld [vmem:[%s2 + $0x50] sm:$0xff]
        %v256 = vld [vmem:[%s2 + $0x58] sm:$0xff]
        %v257 = vld [vmem:[%s2 + $0x60] sm:$0xff]
        %259 = vset.pattern.permute.xlu0 0
        %260 = vperm.xlu0 %259, %v245
        %v261 = vpop.permute.xlu0 %260
        %264 = vset.pattern.permute.xlu0 0
        %265 = vperm.xlu0 %264, %v246
        %v266 = vpop.permute.xlu0 %265
        %269 = vset.pattern.permute.xlu0 0
        %270 = vperm.xlu0 %269, %v247
        %v271 = vpop.permute.xlu0 %270
        %274 = vset.pattern.permute.xlu0 0
        %275 = vperm.xlu0 %274, %v248
        %v276 = vpop.permute.xlu0 %275
        %279 = vset.pattern.permute.xlu0 0
        %280 = vperm.xlu0 %279, %v249
        %v281 = vpop.permute.xlu0 %280
        %284 = vset.pattern.permute.xlu0 0
        %285 = vperm.xlu0 %284, %v250
        %v286 = vpop.permute.xlu0 %285
        %289 = vset.pattern.permute.xlu0 0
        %290 = vperm.xlu0 %289, %v251
        %v291 = vpop.permute.xlu0 %290
        %294 = vset.pattern.permute.xlu0 0
        %295 = vperm.xlu0 %294, %v252
        %v296 = vpop.permute.xlu0 %295
        %299 = vset.pattern.permute.xlu0 0
        %300 = vperm.xlu0 %299, %v253
        %v301 = vpop.permute.xlu0 %300
        %304 = vset.pattern.permute.xlu0 0
        %305 = vperm.xlu0 %304, %v254
        %v306 = vpop.permute.xlu0 %305
        %309 = vset.pattern.permute.xlu0 0
        %310 = vperm.xlu0 %309, %v255
        %v311 = vpop.permute.xlu0 %310
        %314 = vset.pattern.permute.xlu0 0
        %315 = vperm.xlu0 %314, %v256
        %v316 = vpop.permute.xlu0 %315
        %319 = vset.pattern.permute.xlu0 0
        %320 = vperm.xlu0 %319, %v257
        %v321 = vpop.permute.xlu0 %320
        %v336 = vunpack.c.l.b16 %v232
        %v337 = vunpack.c.l.b16 %v233
        %v338 = vunpack.c.l.b16 %v234
        %v339 = vunpack.c.l.b16 %v235
        %v340 = vunpack.c.l.b16 %v236
        %v341 = vunpack.c.l.b16 %v237
        %v342 = vunpack.c.l.b16 %v238
        %v343 = vunpack.c.l.b16 %v239
        %v344 = vunpack.c.l.b16 %v240
        %v345 = vunpack.c.l.b16 %v241
        %v346 = vunpack.c.l.b16 %v242
        %v347 = vunpack.c.l.b16 %v243
        %v348 = vunpack.c.l.b16 %v244
        %v349 = vpack.c.b16 %v337, %v336
        %v350 = vpack.c.b16 %v339, %v338
        %v351 = vpack.c.b16 %v341, %v340
        %v352 = vpack.c.b16 %v343, %v342
        %v353 = vpack.c.b16 %v345, %v344
        %v354 = vpack.c.b16 %v347, %v346
        %v355 = vpack.c.b16 %v348, %v348
        %v364 = vunpack.c.l.b16 %v224
        %v365 = vunpack.c.h.b16 %v224
        %v366 = vunpack.c.l.b16 %v225
        %v367 = vunpack.c.h.b16 %v225
        %v368 = vunpack.c.l.b16 %v226
        %v369 = vunpack.c.h.b16 %v226
        %v370 = vunpack.c.l.b16 %v227
        %v371 = vunpack.c.h.b16 %v227
        %v372 = vunpack.c.l.b16 %v228
        %v373 = vunpack.c.h.b16 %v228
        %v374 = vunpack.c.l.b16 %v229
        %v375 = vunpack.c.h.b16 %v229
        %v376 = vunpack.c.l.b16 %v230
        %v377 = vunpack.c.h.b16 %v230
        %v378 = vunpack.c.l.b16 %v231
        %v379 = vunpack.c.h.b16 %v231
        %v380 = vpack.c.b16 %v366, %v364
        %v381 = vpack.c.b16 %v367, %v365
        %v382 = vpack.c.b16 %v370, %v368
        %v383 = vpack.c.b16 %v371, %v369
        %v384 = vpack.c.b16 %v374, %v372
        %v385 = vpack.c.b16 %v375, %v373
        %v386 = vpack.c.b16 %v378, %v376
        %v387 = vpack.c.b16 %v379, %v377
        %vm396 = vcmask 523264
        %v398 = vsel %vm396, %v349, 0
        %v401 = vsel %vm396, %v350, 0
        %v404 = vsel %vm396, %v351, 0
        %v407 = vsel %vm396, %v352, 0
        %v410 = vsel %vm396, %v353, 0
        %v413 = vsel %vm396, %v354, 0
        %v416 = vsel %vm396, %v355, 0
        %418 = vmatprep.subr.bf16.mxu0 %v381
        %419 = vmatpush1.bf16.msra.mxu0 %v380
        %420 = vmatprep.subr.bf16.mxu0 %v383
        %421 = vmatpush1.bf16.msra.mxu0 %v382
        %422 = vmatprep.subr.bf16.mxu0 %v385
        %423 = vmatpush1.bf16.msra.mxu0 %v384
        %424 = vmatprep.subr.bf16.mxu0 %v387
        %425 = vmatpush1.bf16.msra.mxu0 %v386
        %426 = vmatprep.subr.bf16.mxu0 0
        %427 = vmatpush1.bf16.msra.mxu0 0
        %428 = vmatprep.subr.bf16.mxu0 0
        %429 = vmatpush1.bf16.msra.mxu0 0
        %430 = vmatprep.subr.bf16.mxu0 0
        %431 = vmatpush1.bf16.msra.mxu0 0
        %432 = vmatprep.subr.bf16.mxu0 0
        %433 = vmatpush1.bf16.msra.mxu0 0
        %434 = vmatprep.subr.bf16.mxu0 0
        %435 = vmatpush1.bf16.msra.mxu0 0
        %436 = vmatprep.subr.bf16.mxu0 0
        %437 = vmatpush1.bf16.msra.mxu0 0
        %438 = vmatprep.subr.bf16.mxu0 0
        %439 = vmatpush1.bf16.msra.mxu0 0
        %440 = vmatprep.subr.bf16.mxu0 0
        %441 = vmatpush1.bf16.msra.mxu0 0
        %442 = vmatprep.subr.bf16.mxu0 0
        %443 = vmatpush1.bf16.msra.mxu0 0
        %444 = vmatprep.subr.bf16.mxu0 0
        %445 = vmatpush1.bf16.msra.mxu0 0
        %446 = vmatprep.subr.bf16.mxu0 0
        %447 = vmatpush1.bf16.msra.mxu0 0
        %448 = vmatprep.subr.bf16.mxu0 0
        %449 = vmatpush1.bf16.msra.mxu0 0
        %450 = vmatprep.mubr.bf16.mxu0 0
        %451 = vmatmul.mubr.bf16.gmra.mrb[0].mxu0 %v398
        %v452 = vpop.f32.mrb[0].mxu0
        %v453 = vadd.f32 %v261, %v452
        %v454 = vpop.f32.mrb[0].mxu0
        %v455 = vadd.f32 %v261, %v454
        %v456 = vpop.f32.mrb[0].mxu0
        %v457 = vadd.f32 %v266, %v456
        %v458 = vpop.f32.mrb[0].mxu0
        %v459 = vadd.f32 %v266, %v458
        %460 = vmatprep.mubr.bf16.mxu0 0
        %461 = vmatmul.mubr.bf16.gmra.mrb[0].mxu0 %v401
        %v462 = vpop.f32.mrb[0].mxu0
        %v463 = vadd.f32 %v271, %v462
        %v464 = vpop.f32.mrb[0].mxu0
        %v465 = vadd.f32 %v271, %v464
        %v466 = vpop.f32.mrb[0].mxu0
        %v467 = vadd.f32 %v276, %v466
        %v468 = vpop.f32.mrb[0].mxu0
        %v469 = vadd.f32 %v276, %v468
        %470 = vmatprep.mubr.bf16.mxu0 0
        %471 = vmatmul.mubr.bf16.gmra.mrb[0].mxu0 %v404
        %v472 = vpop.f32.mrb[0].mxu0
        %v473 = vadd.f32 %v281, %v472
        %v474 = vpop.f32.mrb[0].mxu0
        %v475 = vadd.f32 %v281, %v474
        %v476 = vpop.f32.mrb[0].mxu0
        %v477 = vadd.f32 %v286, %v476
        %v478 = vpop.f32.mrb[0].mxu0
        %v479 = vadd.f32 %v286, %v478
        %480 = vmatprep.mubr.bf16.mxu0 0
        %481 = vmatmul.mubr.bf16.gmra.mrb[0].mxu0 %v407
        %v482 = vpop.f32.mrb[0].mxu0
        %v483 = vadd.f32 %v291, %v482
        %v484 = vpop.f32.mrb[0].mxu0
        %v485 = vadd.f32 %v291, %v484
        %v486 = vpop.f32.mrb[0].mxu0
        %v487 = vadd.f32 %v296, %v486
        %v488 = vpop.f32.mrb[0].mxu0
        %v489 = vadd.f32 %v296, %v488
        %490 = vmatprep.mubr.bf16.mxu0 0
        %491 = vmatmul.mubr.bf16.gmra.mrb[0].mxu0 %v410
        %v492 = vpop.f32.mrb[0].mxu0
        %v493 = vadd.f32 %v301, %v492
        %v494 = vpop.f32.mrb[0].mxu0
        %v495 = vadd.f32 %v301, %v494
        %v496 = vpop.f32.mrb[0].mxu0
        %v497 = vadd.f32 %v306, %v496
        %v498 = vpop.f32.mrb[0].mxu0
        %v499 = vadd.f32 %v306, %v498
        %500 = vmatprep.mubr.bf16.mxu0 0
        %501 = vmatmul.mubr.bf16.gmra.mrb[0].mxu0 %v413
        %v502 = vpop.f32.mrb[0].mxu0
        %v503 = vadd.f32 %v311, %v502
        %v504 = vpop.f32.mrb[0].mxu0
        %v505 = vadd.f32 %v311, %v504
        %v506 = vpop.f32.mrb[0].mxu0
        %v507 = vadd.f32 %v316, %v506
        %v508 = vpop.f32.mrb[0].mxu0
        %v509 = vadd.f32 %v316, %v508
        %510 = vmatprep.mubr.bf16.mxu0 0
        %511 = vmatmul.mubr.bf16.gmra.mrb[0].mxu0 %v416
        %v512 = vpop.f32.mrb[0].mxu0
        %v513 = vadd.f32 %v321, %v512
        %v514 = vpop.f32.mrb[0].mxu0
        %v515 = vadd.f32 %v321, %v514
        %v516 = vpop.f32.mrb[0].mxu0
        %v517 = vpop.f32.mrb[0].mxu0
        %518 = vdwg.mxu0
        %v519 = vld [vmem:[%s4] sm:$0xff]
        %v520 = vld [vmem:[%s4 + $0x8] sm:$0xff]
        %v521 = vld [vmem:[%s4 + $0x10] sm:$0xff]
        %v522 = vld [vmem:[%s4 + $0x18] sm:$0xff]
        %v523 = vld [vmem:[%s4 + $0x20] sm:$0xff]
        %v524 = vld [vmem:[%s4 + $0x28] sm:$0xff]
        %v525 = vld [vmem:[%s4 + $0x30] sm:$0xff]
        %v526 = vld [vmem:[%s4 + $0x38] sm:$0xff]
        %vm527 = vcmask 1040384
        %v528 = vsel %vm527, %v513, -inf
        %v529 = vsel %vm527, %v515, -inf
        %v530 = vmax.f32 %v528, %v529
        %531 = vmax.xlane.f32.xlu0 %v530
        %v532 = vpop.xlane.xlu0 %531
        %v533 = vsub.f32 %v513, %v532
        %v534 = vsub.f32 %v515, %v532
        %v535 = vmul.f32 %v533, 1.442695
        %v536 = vpow.pop %v535
        %v537 = vmul.f32 %v534, 1.442695
        %v538 = vpow.pop %v537
        %v539 = vsel %vm527, %v536, 0.0
        %v540 = vsel %vm527, %v538, 0.0
        %v541 = vadd.f32 %v539, %v540
        %542 = vadd.xlane.f32.xlu0 %v541
        %v543 = vpop.xlane.xlu0 %542
        %v544 = vrcp.pop %v543
        %v545 = vmul.f32 %v536, %v544
        %v546 = vmul.f32 %v538, %v544
        %v547 = vlaneseq
        %v548 = vshrl.u32 %v547, 7
        %v549 = vsub.s32 0, %v548
        %v550 = vrot.slane %v545, %v549
        %v551 = vlaneseq
        %v552 = vshrl.u32 %v551, 7
        %v553 = vsub.s32 0, %v552
        %v554 = vrot.slane %v546, %v553
        %v555 = vmul.f32 %v453, %v550
        %v556 = vmul.f32 %v455, %v554
        %v557 = vmul.f32 %v457, %v550
        %v558 = vmul.f32 %v459, %v554
        %v559 = vmul.f32 %v463, %v550
        %v560 = vmul.f32 %v465, %v554
        %v561 = vmul.f32 %v467, %v550
        %v562 = vmul.f32 %v469, %v554
        %v563 = vadd.f32 %v555, %v556
        %564 = vadd.xlane.f32.xlu0 %v563
        %v565 = vpop.xlane.xlu0 %564
        %v566 = vadd.f32 %v557, %v558
        %567 = vadd.xlane.f32.xlu0 %v566
        %v568 = vpop.xlane.xlu0 %567
        %v569 = vadd.f32 %v559, %v560
        %570 = vadd.xlane.f32.xlu0 %v569
        %v571 = vpop.xlane.xlu0 %570
        %v572 = vadd.f32 %v561, %v562
        %573 = vadd.xlane.f32.xlu0 %v572
        %v574 = vpop.xlane.xlu0 %573
        %v575 = vld [vmem:[%s3] sm:$0xf]
        %v576 = vld [vmem:[%s3 + $0x4] sm:$0xf]
        %v577 = vld [vmem:[%s3 + $0x8] sm:$0xf]
        %v578 = vld [vmem:[%s3 + $0xc] sm:$0xf]
        %v579 = vld [vmem:[%s3 + $0x10] sm:$0xf]
        %v580 = vld [vmem:[%s3 + $0x14] sm:$0xf]
        %v581 = vld [vmem:[%s3 + $0x18] sm:$0xf]
        %v582 = vld [vmem:[%s3 + $0x1c] sm:$0xf]
        %v583 = vpack.c.bf16 %v568, %v565
        %v584 = vpack.c.bf16 %v574, %v571
        %v593 = vunpack.c.l.b16 %v575
        %v594 = vunpack.c.l.b16 %v576
        %v595 = vunpack.c.l.b16 %v577
        %v596 = vunpack.c.l.b16 %v578
        %v597 = vunpack.c.l.b16 %v579
        %v598 = vunpack.c.l.b16 %v580
        %v599 = vunpack.c.l.b16 %v581
        %v600 = vunpack.c.l.b16 %v582
        %v601 = vpack.c.b16 %v594, %v593
        %v602 = vpack.c.b16 %v596, %v595
        %v603 = vpack.c.b16 %v598, %v597
        %v604 = vpack.c.b16 %v600, %v599
        %vm605 = vcmask 261120
        %v607 = vsel %vm605, %v601, 0
        %v610 = vsel %vm605, %v602, 0
        %v613 = vsel %vm605, %v603, 0
        %v616 = vsel %vm605, %v604, 0
        %618 = vmatprep.subr.bf16.mxu0 0
        %619 = vmatpush1.bf16.msra.mxu0 %v583
        %620 = vmatprep.subr.bf16.mxu0 0
        %621 = vmatpush1.bf16.msra.mxu0 %v584
        %622 = vmatprep.subr.bf16.mxu0 0
        %623 = vmatpush1.bf16.msra.mxu0 0
        %624 = vmatprep.subr.bf16.mxu0 0
        %625 = vmatpush1.bf16.msra.mxu0 0
        %626 = vmatprep.subr.bf16.mxu0 0
        %627 = vmatpush1.bf16.msra.mxu0 0
        %628 = vmatprep.subr.bf16.mxu0 0
        %629 = vmatpush1.bf16.msra.mxu0 0
        %630 = vmatprep.subr.bf16.mxu0 0
        %631 = vmatpush1.bf16.msra.mxu0 0
        %632 = vmatprep.subr.bf16.mxu0 0
        %633 = vmatpush1.bf16.msra.mxu0 0
        %634 = vmatprep.subr.bf16.mxu0 0
        %635 = vmatpush1.bf16.msra.mxu0 0
        %636 = vmatprep.subr.bf16.mxu0 0
        %637 = vmatpush1.bf16.msra.mxu0 0
        %638 = vmatprep.subr.bf16.mxu0 0
        %639 = vmatpush1.bf16.msra.mxu0 0
        %640 = vmatprep.subr.bf16.mxu0 0
        %641 = vmatpush1.bf16.msra.mxu0 0
        %642 = vmatprep.subr.bf16.mxu0 0
        %643 = vmatpush1.bf16.msra.mxu0 0
        %644 = vmatprep.subr.bf16.mxu0 0
        %645 = vmatpush1.bf16.msra.mxu0 0
        %646 = vmatprep.subr.bf16.mxu0 0
        %647 = vmatpush1.bf16.msra.mxu0 0
        %648 = vmatprep.subr.bf16.mxu0 0
        %649 = vmatpush1.bf16.msra.mxu0 0
        %650 = vmatprep.mubr.bf16.mxu0 0
        %651 = vmatmul.mubr.bf16.gmra.mrb[0].mxu0 %v607
        %v652 = vpop.f32.mrb[0].mxu0
        %v653 = vadd.f32 %v519, %v652
        %v654 = vpop.f32.mrb[0].mxu0
        %v655 = vpop.f32.mrb[0].mxu0
        %v656 = vadd.f32 %v520, %v655
        %v657 = vpop.f32.mrb[0].mxu0
        %658 = vmatprep.mubr.bf16.mxu0 0
        %659 = vmatmul.mubr.bf16.gmra.mrb[0].mxu0 %v610
        %v660 = vpop.f32.mrb[0].mxu0
        %v661 = vadd.f32 %v521, %v660
        %v662 = vpop.f32.mrb[0].mxu0
        %v663 = vpop.f32.mrb[0].mxu0
        %v664 = vadd.f32 %v522, %v663
        %v665 = vpop.f32.mrb[0].mxu0
        %666 = vmatprep.mubr.bf16.mxu0 0
        %667 = vmatmul.mubr.bf16.gmra.mrb[0].mxu0 %v613
        %v668 = vpop.f32.mrb[0].mxu0
        %v669 = vadd.f32 %v523, %v668
        %v670 = vpop.f32.mrb[0].mxu0
        %v671 = vpop.f32.mrb[0].mxu0
        %v672 = vadd.f32 %v524, %v671
        %v673 = vpop.f32.mrb[0].mxu0
        %674 = vmatprep.mubr.bf16.mxu0 0
        %675 = vmatmul.mubr.bf16.gmra.mrb[0].mxu0 %v616
        %v676 = vpop.f32.mrb[0].mxu0
        %v677 = vadd.f32 %v525, %v676
        %v678 = vpop.f32.mrb[0].mxu0
        %v679 = vpop.f32.mrb[0].mxu0
        %v680 = vadd.f32 %v526, %v679
        %v681 = vpop.f32.mrb[0].mxu0
        %682 = vdwg.mxu0
        %vm683 = vcmask 7168
        %v684 = vsel %vm683, %v653, 0.0
        %v685 = vsel %vm683, %v656, 0.0
        %v686 = vadd.f32 %v684, %v685
        %v687 = vsel %vm683, %v661, 0.0
        %v688 = vadd.f32 %v686, %v687
        %v689 = vsel %vm683, %v664, 0.0
        %v690 = vadd.f32 %v688, %v689
        %v691 = vsel %vm683, %v669, 0.0
        %v692 = vadd.f32 %v690, %v691
        %v693 = vsel %vm683, %v672, 0.0
        %v694 = vadd.f32 %v692, %v693
        %v695 = vsel %vm683, %v677, 0.0
        %v696 = vadd.f32 %v694, %v695
        %v697 = vsel %vm683, %v680, 0.0
        %v698 = vadd.f32 %v696, %v697
        %v699 = vrot.slane %v698, 4
        %v700 = vadd.f32 %v698, %v699
        %v701 = vrot.slane %v700, 2
        %v702 = vadd.f32 %v700, %v701
        %v703 = vrot.slane %v702, 1
        %v704 = vadd.f32 %v702, %v703
        %v705 = vrcp.pop 64.0
        %v706 = vmul.f32 %v704, %v705
        %v707 = vsub.f32 %v653, %v706
        %v708 = vsub.f32 %v656, %v706
        %v709 = vsub.f32 %v661, %v706
        %v710 = vsub.f32 %v664, %v706
        %v711 = vsub.f32 %v669, %v706
        %v712 = vsub.f32 %v672, %v706
        %v713 = vsub.f32 %v677, %v706
        %v714 = vsub.f32 %v680, %v706
        %v715 = vmul.f32 %v707, %v707
        %v716 = vmul.f32 %v708, %v708
        %v717 = vmul.f32 %v709, %v709
        %v718 = vmul.f32 %v710, %v710
        %v719 = vmul.f32 %v711, %v711
        %v720 = vmul.f32 %v712, %v712
        %v721 = vmul.f32 %v713, %v713
        %v722 = vmul.f32 %v714, %v714
        %v723 = vsel %vm683, %v715, 0.0
        %v724 = vsel %vm683, %v716, 0.0
        %v725 = vadd.f32 %v723, %v724
        %v726 = vsel %vm683, %v717, 0.0
        %v727 = vadd.f32 %v725, %v726
        %v728 = vsel %vm683, %v718, 0.0
        %v729 = vadd.f32 %v727, %v728
        %v730 = vsel %vm683, %v719, 0.0
        %v731 = vadd.f32 %v729, %v730
        %v732 = vsel %vm683, %v720, 0.0
        %v733 = vadd.f32 %v731, %v732
        %v734 = vsel %vm683, %v721, 0.0
        %v735 = vadd.f32 %v733, %v734
        %v736 = vsel %vm683, %v722, 0.0
        %v737 = vadd.f32 %v735, %v736
        %v738 = vrot.slane %v737, 4
        %v739 = vadd.f32 %v737, %v738
        %v740 = vrot.slane %v739, 2
        %v741 = vadd.f32 %v739, %v740
        %v742 = vrot.slane %v741, 1
        %v743 = vadd.f32 %v741, %v742
        %v744 = vmul.f32 %v743, %v705
        %v745 = vadd.f32 %v744, 1e-05
        %v746 = vrsqrt.pop %v745
        %v747 = vmul.f32 %v707, %v746
        %v748 = vmul.f32 %v708, %v746
        %v749 = vmul.f32 %v709, %v746
        %v750 = vmul.f32 %v710, %v746
        %v751 = vmul.f32 %v711, %v746
        %v752 = vmul.f32 %v712, %v746
        %v753 = vmul.f32 %v713, %v746
        %v754 = vmul.f32 %v714, %v746
        %763 = vrot.lane.b32.xlu0 %v519, 127
        %v764 = vpop.permute.xlu0 %763
        %765 = vrot.lane.b32.xlu0 %v520, 127
        %v766 = vpop.permute.xlu0 %765
        %767 = vrot.lane.b32.xlu0 %v521, 127
        %v768 = vpop.permute.xlu0 %767
        %769 = vrot.lane.b32.xlu0 %v522, 127
        %v770 = vpop.permute.xlu0 %769
        %771 = vrot.lane.b32.xlu0 %v523, 127
        %v772 = vpop.permute.xlu0 %771
        %773 = vrot.lane.b32.xlu0 %v524, 127
        %v774 = vpop.permute.xlu0 %773
        %775 = vrot.lane.b32.xlu0 %v525, 127
        %v776 = vpop.permute.xlu0 %775
        %777 = vrot.lane.b32.xlu0 %v526, 127
        %v778 = vpop.permute.xlu0 %777
        %v787 = vmul.f32 %v747, %v764
        %v788 = vmul.f32 %v748, %v766
        %v789 = vmul.f32 %v749, %v768
        %v790 = vmul.f32 %v750, %v770
        %v791 = vmul.f32 %v751, %v772
        %v792 = vmul.f32 %v752, %v774
        %v793 = vmul.f32 %v753, %v776
        %v794 = vmul.f32 %v754, %v778
        %795 = vrot.lane.b32.xlu0 %v519, 126
        %v796 = vpop.permute.xlu0 %795
        %797 = vrot.lane.b32.xlu0 %v520, 126
        %v798 = vpop.permute.xlu0 %797
        %799 = vrot.lane.b32.xlu0 %v521, 126
        %v800 = vpop.permute.xlu0 %799
        %801 = vrot.lane.b32.xlu0 %v522, 126
        %v802 = vpop.permute.xlu0 %801
        %803 = vrot.lane.b32.xlu0 %v523, 126
        %v804 = vpop.permute.xlu0 %803
        %805 = vrot.lane.b32.xlu0 %v524, 126
        %v806 = vpop.permute.xlu0 %805
        %807 = vrot.lane.b32.xlu0 %v525, 126
        %v808 = vpop.permute.xlu0 %807
        %809 = vrot.lane.b32.xlu0 %v526, 126
        %v810 = vpop.permute.xlu0 %809
        %v819 = vadd.f32 %v787, %v796
        %v820 = vadd.f32 %v788, %v798
        %v821 = vadd.f32 %v789, %v800
        %v822 = vadd.f32 %v790, %v802
        %v823 = vadd.f32 %v791, %v804
        %v824 = vadd.f32 %v792, %v806
        %v825 = vadd.f32 %v793, %v808
        %v826 = vadd.f32 %v794, %v810
        %v827 = vxor.u32 %v819, 2147483648
        %v828 = vxor.u32 %v820, 2147483648
        %v829 = vxor.u32 %v821, 2147483648
        %v830 = vxor.u32 %v822, 2147483648
        %v831 = vxor.u32 %v823, 2147483648
        %v832 = vxor.u32 %v824, 2147483648
        %v833 = vxor.u32 %v825, 2147483648
        %v834 = vxor.u32 %v826, 2147483648
        %v835 = vmul.f32 %v827, 1.442695
        %v836 = vpow.pop %v835
        %v837 = vmul.f32 %v828, 1.442695
        %v838 = vpow.pop %v837
        %v839 = vmul.f32 %v829, 1.442695
        %v840 = vpow.pop %v839
        %v841 = vmul.f32 %v830, 1.442695
        %v842 = vpow.pop %v841
        %v843 = vmul.f32 %v831, 1.442695
        %v844 = vpow.pop %v843
        %v845 = vmul.f32 %v832, 1.442695
        %v846 = vpow.pop %v845
        %v847 = vmul.f32 %v833, 1.442695
        %v848 = vpow.pop %v847
        %v849 = vmul.f32 %v834, 1.442695
        %v850 = vpow.pop %v849
        %v851 = vadd.f32 %v836, 1.0
        %v852 = vadd.f32 %v838, 1.0
        %v853 = vadd.f32 %v840, 1.0
        %v854 = vadd.f32 %v842, 1.0
        %v855 = vadd.f32 %v844, 1.0
        %v856 = vadd.f32 %v846, 1.0
        %v857 = vadd.f32 %v848, 1.0
        %v858 = vadd.f32 %v850, 1.0
        %v859 = vrcp.pop %v851
        %v860 = vmul.f32 1.0, %v859
        %v861 = vrcp.pop %v852
        %v862 = vmul.f32 1.0, %v861
        %v863 = vrcp.pop %v853
        %v864 = vmul.f32 1.0, %v863
        %v865 = vrcp.pop %v854
        %v866 = vmul.f32 1.0, %v865
        %v867 = vrcp.pop %v855
        %v868 = vmul.f32 1.0, %v867
        %v869 = vrcp.pop %v856
        %v870 = vmul.f32 1.0, %v869
        %v871 = vrcp.pop %v857
        %v872 = vmul.f32 1.0, %v871
        %v873 = vrcp.pop %v858
        %v874 = vmul.f32 1.0, %v873
        %v875 = vadd.f32 %v493, %v495
        %876 = vadd.xlane.f32.xlu0 %v875
        %v877 = vpop.xlane.xlu0 %876
        %v878 = vadd.f32 %v497, %v499
        %879 = vadd.xlane.f32.xlu0 %v878
        %v880 = vpop.xlane.xlu0 %879
        %v881 = vadd.f32 %v503, %v505
        %882 = vadd.xlane.f32.xlu0 %v881
        %v883 = vpop.xlane.xlu0 %882
        %v884 = vadd.f32 %v507, %v509
        %885 = vadd.xlane.f32.xlu0 %v884
        %v886 = vpop.xlane.xlu0 %885
        %v887 = vrcp.pop 256.0
        %v888 = vmul.f32 %v877, %v887
        %v889 = vmul.f32 %v880, %v887
        %v890 = vmul.f32 %v883, %v887
        %v891 = vmul.f32 %v886, %v887
        %v892 = vmax.f32 %v888, %v889
        %v893 = vmax.f32 %v890, %v891
        %v894 = vmax.f32 %v892, %v893
        %v895 = vrot.slane %v894, 4
        %v896 = vmax.f32 %v894, %v895
        %v897 = vrot.slane %v896, 2
        %v898 = vmax.f32 %v896, %v897
        %v899 = vrot.slane %v898, 1
        %v900 = vmax.f32 %v898, %v899
        %v901 = vsub.f32 %v888, %v900
        %v902 = vsub.f32 %v889, %v900
        %v903 = vsub.f32 %v890, %v900
        %v904 = vsub.f32 %v891, %v900
        %v905 = vmul.f32 %v901, 1.442695
        %v906 = vpow.pop %v905
        %v907 = vmul.f32 %v902, 1.442695
        %v908 = vpow.pop %v907
        %v909 = vmul.f32 %v903, 1.442695
        %v910 = vpow.pop %v909
        %v911 = vmul.f32 %v904, 1.442695
        %v912 = vpow.pop %v911
        %v913 = vadd.f32 %v906, %v908
        %v914 = vadd.f32 %v913, %v910
        %v915 = vadd.f32 %v914, %v912
        %v916 = vrot.slane %v915, 4
        %v917 = vadd.f32 %v915, %v916
        %v918 = vrot.slane %v917, 2
        %v919 = vadd.f32 %v917, %v918
        %v920 = vrot.slane %v919, 1
        %v921 = vadd.f32 %v919, %v920
        %v922 = vrcp.pop %v921
        %v923 = vmul.f32 %v906, %v922
        %v924 = vmul.f32 %v908, %v922
        %v925 = vmul.f32 %v910, %v922
        %v926 = vmul.f32 %v912, %v922
        %v927 = vmul.f32 %v473, %v923
        %v928 = vmul.f32 %v475, %v923
        %v929 = vmul.f32 %v477, %v924
        %v930 = vmul.f32 %v479, %v924
        %v931 = vmul.f32 %v483, %v925
        %v932 = vmul.f32 %v485, %v925
        %v933 = vmul.f32 %v487, %v926
        %v934 = vmul.f32 %v489, %v926
        %v935 = vadd.f32 %v927, %v929
        %v936 = vadd.f32 %v935, %v931
        %v937 = vadd.f32 %v936, %v933
        %v938 = vrot.slane %v937, 4
        %v939 = vadd.f32 %v937, %v938
        %v940 = vrot.slane %v939, 2
        %v941 = vadd.f32 %v939, %v940
        %v942 = vrot.slane %v941, 1
        %v943 = vadd.f32 %v941, %v942
        %v944 = vadd.f32 %v928, %v930
        %v945 = vadd.f32 %v944, %v932
        %v946 = vadd.f32 %v945, %v934
        %v947 = vrot.slane %v946, 4
        %v948 = vadd.f32 %v946, %v947
        %v949 = vrot.slane %v948, 2
        %v950 = vadd.f32 %v948, %v949
        %v951 = vrot.slane %v950, 1
        %v952 = vadd.f32 %v950, %v951
        %v953 = vxor.u32 %v943, 2147483648
        %v954 = vxor.u32 %v952, 2147483648
        %v955 = vmul.f32 %v953, 1.442695
        %v956 = vpow.pop %v955
        %v957 = vmul.f32 %v954, 1.442695
        %v958 = vpow.pop %v957
        %v959 = vadd.f32 %v956, 1.0
        %v960 = vadd.f32 %v958, 1.0
        %v961 = vrcp.pop %v959
        %v962 = vmul.f32 1.0, %v961
        %v963 = vrcp.pop %v960
        %v964 = vmul.f32 1.0, %v963
        %v965 = vunpack.c.l.bf16 %v224
        %v966 = vunpack.c.h.bf16 %v224
        %v967 = vunpack.c.l.bf16 %v225
        %v968 = vunpack.c.h.bf16 %v225
        %v969 = vunpack.c.l.bf16 %v226
        %v970 = vunpack.c.h.bf16 %v226
        %v971 = vunpack.c.l.bf16 %v227
        %v972 = vunpack.c.h.bf16 %v227
        %v973 = vunpack.c.l.bf16 %v228
        %v974 = vunpack.c.h.bf16 %v228
        %v975 = vunpack.c.l.bf16 %v229
        %v976 = vunpack.c.h.bf16 %v229
        %v977 = vunpack.c.l.bf16 %v230
        %v978 = vunpack.c.h.bf16 %v230
        %v979 = vunpack.c.l.bf16 %v231
        %v980 = vunpack.c.h.bf16 %v231
        %v981 = vadd.f32 %v962, 1.0
        %v982 = vadd.f32 %v964, 1.0
        %984 = vset.pattern.permute.xlu0 0
        %985 = vperm.xlu0 %984, %v860
        %v986 = vpop.permute.xlu0 %985
        %989 = vset.pattern.permute.xlu0 0
        %990 = vperm.xlu0 %989, %v862
        %v991 = vpop.permute.xlu0 %990
        %994 = vset.pattern.permute.xlu0 0
        %995 = vperm.xlu0 %994, %v864
        %v996 = vpop.permute.xlu0 %995
        %999 = vset.pattern.permute.xlu0 0
        %1000 = vperm.xlu0 %999, %v866
        %v1001 = vpop.permute.xlu0 %1000
        %1004 = vset.pattern.permute.xlu0 0
        %1005 = vperm.xlu0 %1004, %v868
        %v1006 = vpop.permute.xlu0 %1005
        %1009 = vset.pattern.permute.xlu0 0
        %1010 = vperm.xlu0 %1009, %v870
        %v1011 = vpop.permute.xlu0 %1010
        %1014 = vset.pattern.permute.xlu0 0
        %1015 = vperm.xlu0 %1014, %v872
        %v1016 = vpop.permute.xlu0 %1015
        %1019 = vset.pattern.permute.xlu0 0
        %1020 = vperm.xlu0 %1019, %v874
        %v1021 = vpop.permute.xlu0 %1020
        %v1023 = vadd.f32 %v981, %v986
        %v1024 = vadd.f32 %v982, %v986
        %v1025 = vadd.f32 %v981, %v991
        %v1026 = vadd.f32 %v982, %v991
        %v1027 = vadd.f32 %v981, %v996
        %v1028 = vadd.f32 %v982, %v996
        %v1029 = vadd.f32 %v981, %v1001
        %v1030 = vadd.f32 %v982, %v1001
        %v1031 = vadd.f32 %v981, %v1006
        %v1032 = vadd.f32 %v982, %v1006
        %v1033 = vadd.f32 %v981, %v1011
        %v1034 = vadd.f32 %v982, %v1011
        %v1035 = vadd.f32 %v981, %v1016
        %v1036 = vadd.f32 %v982, %v1016
        %v1037 = vadd.f32 %v981, %v1021
        %v1038 = vadd.f32 %v982, %v1021
        %v1039 = vmul.f32 %v965, %v1023
        %v1040 = vmul.f32 %v966, %v1024
        %v1041 = vmul.f32 %v967, %v1025
        %v1042 = vmul.f32 %v968, %v1026
        %v1043 = vmul.f32 %v969, %v1027
        %v1044 = vmul.f32 %v970, %v1028
        %v1045 = vmul.f32 %v971, %v1029
        %v1046 = vmul.f32 %v972, %v1030
        %v1047 = vmul.f32 %v973, %v1031
        %v1048 = vmul.f32 %v974, %v1032
        %v1049 = vmul.f32 %v975, %v1033
        %v1050 = vmul.f32 %v976, %v1034
        %v1051 = vmul.f32 %v977, %v1035
        %v1052 = vmul.f32 %v978, %v1036
        %v1053 = vmul.f32 %v979, %v1037
        %v1054 = vmul.f32 %v980, %v1038
        %1055 = vst [vmem:[%s217] sm:$0xff] %v1039
        %1056 = vst [vmem:[%s217 + $0x8] sm:$0xff] %v1040
        %1057 = vst [vmem:[%s217 + $0x10] sm:$0xff] %v1041
        %1058 = vst [vmem:[%s217 + $0x18] sm:$0xff] %v1042
        %1059 = vst [vmem:[%s217 + $0x20] sm:$0xff] %v1043
        %1060 = vst [vmem:[%s217 + $0x28] sm:$0xff] %v1044
        %1061 = vst [vmem:[%s217 + $0x30] sm:$0xff] %v1045
        %1062 = vst [vmem:[%s217 + $0x38] sm:$0xff] %v1046
        %1063 = vst [vmem:[%s217 + $0x40] sm:$0xff] %v1047
        %1064 = vst [vmem:[%s217 + $0x48] sm:$0xff] %v1048
        %1065 = vst [vmem:[%s217 + $0x50] sm:$0xff] %v1049
        %1066 = vst [vmem:[%s217 + $0x58] sm:$0xff] %v1050
        %1067 = vst [vmem:[%s217 + $0x60] sm:$0xff] %v1051
        %1068 = vst [vmem:[%s217 + $0x68] sm:$0xff] %v1052
        %1069 = vst [vmem:[%s217 + $0x70] sm:$0xff] %v1053
        %1070 = vst [vmem:[%s217 + $0x78] sm:$0xff] %v1054
        %s1071 = sand.u32 %s137, 1
        %s1072 = scalar_lea.sflag [#allocation3], %s1071
        %s1073 = sand.u32 %s137, 1
        %s1074 = smul.addr %s1073, 128
        %s1075 = scalar_lea.vmem [#allocation2], %s1074
        // Predicated region
        $region41: #{tpu_custom_call.1} parent=39 // pred_check
          %p1076 = pneg %p147
        $region42: #{tpu_custom_call.1} parent=39 // pred_check_branch
          %1078 = sbr.rel (%p1076) target = $region44
        $region43: #{tpu_custom_call.1} parent=39 // pred_region
          %s1080 = ssub.s32 2048, 2048
          %1081 = vsyncadd %s1072, %s1080
          %s1082 = smul.addr %s19, 16
          %s1083 = smul.addr %s1082, 128
          %s1084 = scalar_lea.hbm %s5, %s1083
          %s1085 = sshll.u32 %s1075, 4
          %s1086 = int_to_ptr.vmem [resolvable:$true] %s1085
          %1091 = dma.vmem_to_hbm [thread:$0]  %s1086, 2048, %s1084, %s1072, 256, 256, 16
        $region44: #{tpu_custom_call.1} parent=39 // pred_fallthru
          _
      $region40: #{tpu_custom_call.1} parent=5 // pred_fallthru
        _
      %p1092 = scmp.le.s32.totalorder 2, %s14
      // Predicated region
      $region45: #{tpu_custom_call.1} parent=5 // pred_check
        %p1093 = pneg %p1092
      $region46: #{tpu_custom_call.1} parent=5 // pred_check_branch
        %1095 = sbr.rel (%p1093) target = $region48
      $region47: #{tpu_custom_call.1} parent=5 // pred_region
        %s1096 = ssub.s32 %s14, 2
        // Predicated region
        $region49: #{tpu_custom_call.1} parent=47 // pred_check
          %p1097 = pneg %p153
        $region50: #{tpu_custom_call.1} parent=47 // pred_check_branch
          %1099 = sbr.rel (%p1097) target = $region52
        $region51: #{tpu_custom_call.1} parent=47 // pred_region
          %s1100 = sand.u32 %s138, 1
          %s1101 = scalar_lea.sflag [#allocation3], %s1100
          %s1102 = sand.u32 %s138, 1
          %s1103 = smul.addr %s1102, 128
          %s1104 = scalar_lea.vmem [#allocation2], %s1103
          %1105 = dma.done %s1101, 2048
        $region52: #{tpu_custom_call.1} parent=47 // pred_fallthru
          _
      $region48: #{tpu_custom_call.1} parent=5 // pred_fallthru
        _
    $region6: #{tpu_custom_call.1} parent=1 // loop_footer
      %s18 = sadd.s32 1, %s14
    $region7: #{tpu_custom_call.1} parent=1 // loop_footer_branch
      %13 = sbr.rel target = $region3
    $region8: #{tpu_custom_call.1} parent=1 // loop_exit
      _
    %1106 = vsyncpa [#allocation3], 1
    %s1107 = scalar_lea.sflag [#allocation3], 1
    %1108 = vsyncpa %s1107, 1

</llo_original>
